<compile_context>
chip_gen: v6e
topology: v6e:2x2x1
jax: 0.10.0
libtpu: 0.0.40
codegen_flags: <defaults>
</compile_context>

<pallas_src>
import math
import jax
import jax.numpy as jnp
from jax.experimental import pallas as pl
from jax.experimental.pallas import tpu as pltpu

BATCH = 2
SEQ_LEN = 8
HIDDEN = 32
RELATION_SIZE = 3
VOCAB = 100
TYPE_VOCAB = 2
OUT_DIM = 2 + 2 * RELATION_SIZE * 3          # ent(2) + head(3R) + tail(3R) = 20
OUT_PAD = 128                                # lane-dense output width (rec 2)


def _round_up(x, m):
    return ((x + m - 1) // m) * m


# -----------------------------------------------------------------------------
# Fused kernel (one grid step per batch element):
#   hw        = h @ [Wc1 | Wc2]                       (combine-FC hoisted, B*L rows)
#   hw1, hw2  = hw[:, :H], hw[:, H:] + b_comb
#   pre       = Si @ hw1 + Sj @ hw2                   (triangle-packed pairs, P_pad rows)
#   shaking   = tanh(pre)
#   out       = shaking @ W_all_pad + b_all_pad       (fused ent/head/tail, 128 lanes)
# -----------------------------------------------------------------------------
def tplinker_fused_kernel(h_ref, wc_ref, bc_ref, si_ref, sj_ref,
                          wh_ref, bh_ref, out_ref):
    hidden = wc_ref.shape[0]

    h = h_ref[0]                                               # (L_pad, H)
    hw = jnp.dot(h, wc_ref[...], preferred_element_type=jnp.float32)   # (L_pad, 2H)
    hw1 = hw[:, :hidden]                                       # rep / index-i projection
    hw2 = hw[:, hidden:] + bc_ref[...]                         # vis / index-j projection

    # Gather-as-matmul triangle packing: only the P upper-triangle (i<=j, i,j<L) pairs
    # reach the tanh / head FC; padded rows of Si/Sj are all-zero.
    pre = (jnp.dot(si_ref[...], hw1, preferred_element_type=jnp.float32)
           + jnp.dot(sj_ref[...], hw2, preferred_element_type=jnp.float32))  # (P_pad, H)
    shaking = jnp.tanh(pre)

    out_ref[0] = (jnp.dot(shaking, wh_ref[...], preferred_element_type=jnp.float32)
                  + bh_ref[...])                               # (P_pad, 128) lane-dense


def tplinker_heads_pallas(h_pad, w_comb_cat, b_comb, sel_i, sel_j, w_heads, b_heads):
    batch, l_pad, hidden = h_pad.shape
    p_pad = sel_i.shape[0]
    n_out = w_heads.shape[1]
    return pl.pallas_call(
        tplinker_fused_kernel,
        out_shape=jax.ShapeDtypeStruct((batch, p_pad, n_out), jnp.float32),
        grid_spec=pltpu.PrefetchScalarGridSpec(
            num_scalar_prefetch=0,
            grid=(batch,),
            in_specs=[
                pl.BlockSpec((1, l_pad, hidden), lambda b: (b, 0, 0)),     # encoder out
                pl.BlockSpec((hidden, 2 * hidden), lambda b: (0, 0)),      # combine W
                pl.BlockSpec((1, hidden), lambda b: (0, 0)),               # combine b
                pl.BlockSpec((p_pad, l_pad), lambda b: (0, 0)),            # Si one-hot
                pl.BlockSpec((p_pad, l_pad), lambda b: (0, 0)),            # Sj one-hot
                pl.BlockSpec((hidden, n_out), lambda b: (0, 0)),           # fused head W
                pl.BlockSpec((1, n_out), lambda b: (0, 0)),                # fused head b
            ],
            out_specs=pl.BlockSpec((1, p_pad, n_out), lambda b: (b, 0, 0))),
        compiler_params=pltpu.CompilerParams(
            dimension_semantics=("parallel",)),
    )(h_pad, w_comb_cat, b_comb, sel_i, sel_j, w_heads, b_heads)


def _build_pair_selectors(seq_len, l_pad):
    """One-hot (P_pad, L_pad) selectors for TPLinker's i-major upper-triangle order."""
    i_idx = [i for i in range(seq_len) for j in range(i, seq_len)]
    j_idx = [j for i in range(seq_len) for j in range(i, seq_len)]
    p = len(i_idx)
    p_pad = _round_up(max(p, 8), 8)
    rows = jnp.arange(p)
    si = jnp.zeros((p_pad, l_pad), jnp.float32).at[rows, jnp.array(i_idx)].set(1.0)
    sj = jnp.zeros((p_pad, l_pad), jnp.float32).at[rows, jnp.array(j_idx)].set(1.0)
    return si, sj, p


# -----------------------------------------------------------------------------
# Deterministic parameter init (PyTorch-style uniform(-1/sqrt(fan_in), ...)).
# -----------------------------------------------------------------------------
def init_params(key):
    keys = jax.random.split(key, 12)

    def u(k, shape, fan_in):
        bound = 1.0 / math.sqrt(fan_in)
        return jax.random.uniform(k, shape, jnp.float32, -bound, bound)

    p = {}
    # encoder stub
    p["word_emb"] = jax.random.normal(keys[0], (VOCAB, HIDDEN), jnp.float32) * 0.02
    p["type_emb"] = jax.random.normal(keys[1], (TYPE_VOCAB, HIDDEN), jnp.float32) * 0.02
    p["pos_emb"] = jax.random.normal(keys[2], (SEQ_LEN, HIDDEN), jnp.float32) * 0.02
    p["ln_gamma"] = jnp.ones((HIDDEN,), jnp.float32)
    p["ln_beta"] = jnp.zeros((HIDDEN,), jnp.float32)

    # HandshakingKernel.combine_fc : Linear(2H -> H)   (torch layout: (out, in))
    w_comb = u(keys[3], (HIDDEN, 2 * HIDDEN), 2 * HIDDEN)
    b_comb = u(keys[4], (HIDDEN,), 2 * HIDDEN)
    w_comb1 = jnp.transpose(w_comb[:, :HIDDEN])            # (H_in, H_out), applied to rep (i)
    w_comb2 = jnp.transpose(w_comb[:, HIDDEN:])            # (H_in, H_out), applied to vis (j)
    p["w_comb_cat"] = jnp.concatenate([w_comb1, w_comb2], axis=1)   # (H, 2H)
    p["b_comb"] = b_comb[None, :]

    # ent_fc : Linear(H -> 2);  head/tail relation FC lists : R x Linear(H -> 3)
    w_ent = u(keys[5], (2, HIDDEN), HIDDEN)
    b_ent = u(keys[6], (2,), HIDDEN)
    w_head = u(keys[7], (RELATION_SIZE, 3, HIDDEN), HIDDEN)
    b_head = u(keys[8], (RELATION_SIZE, 3), HIDDEN)
    w_tail = u(keys[9], (RELATION_SIZE, 3, HIDDEN), HIDDEN)
    b_tail = u(keys[10], (RELATION_SIZE, 3), HIDDEN)

    # All heads fused into one (H, 20) matrix, zero-padded to 128 output lanes so the
    # kernel's output stores are unmasked full-lane vst's (rec 2).
    w_all = jnp.concatenate(
        [jnp.transpose(w_ent),                                               # (H, 2)
         jnp.transpose(w_head, (2, 0, 1)).reshape(HIDDEN, RELATION_SIZE * 3),
         jnp.transpose(w_tail, (2, 0, 1)).reshape(HIDDEN, RELATION_SIZE * 3)], axis=1)
    b_all = jnp.concatenate(
        [b_ent[None, :], b_head.reshape(1, -1), b_tail.reshape(1, -1)], axis=1)
    p["w_heads_all"] = jnp.pad(w_all, ((0, 0), (0, OUT_PAD - OUT_DIM)))      # (H, 128)
    p["b_heads_all"] = jnp.pad(b_all, ((0, 0), (0, OUT_PAD - OUT_DIM)))      # (1, 128)

    # torch-layout copies for the pure-JAX reference
    p["_w_comb"], p["_b_comb"] = w_comb, b_comb
    p["_w_ent"], p["_b_ent"] = w_ent, b_ent
    p["_w_head"], p["_b_head"] = w_head, b_head
    p["_w_tail"], p["_b_tail"] = w_tail, b_tail
    return p


def encoder_stub(params, input_ids, attention_mask, token_type_ids):
    del attention_mask  # only gates self-attention in the real encoder
    L = input_ids.shape[1]
    h = (params["word_emb"][input_ids]
         + params["type_emb"][token_type_ids]
         + params["pos_emb"][None, :L, :])
    mean = jnp.mean(h, axis=-1, keepdims=True)
    var = jnp.mean((h - mean) ** 2, axis=-1, keepdims=True)
    h = (h - mean) / jnp.sqrt(var + 1e-12)
    return h * params["ln_gamma"] + params["ln_beta"]


# -----------------------------------------------------------------------------
# Full forward: encoder stub (plain JAX glue) + ONE fused Pallas kernel, then only
# cheap slices / reshapes in the wrapper (no pair-grid gather, no big transposes of
# intermediates at these shapes).
# -----------------------------------------------------------------------------
def tplinker_forward(params, input_ids, attention_mask, token_type_ids):
    B, L = input_ids.shape
    h = encoder_stub(params, input_ids, attention_mask, token_type_ids)   # (B, L, H)

    l_pad = _round_up(L, 8)
    h_pad = jnp.pad(h, ((0, 0), (0, l_pad - L), (0, 0)))

    sel_i, sel_j, P = _build_pair_selectors(L, l_pad)

    out = tplinker_heads_pallas(h_pad, params["w_comb_cat"], params["b_comb"],
                                sel_i, sel_j,
                                params["w_heads_all"], params["b_heads_all"])
    out = out[:, :P, :OUT_DIM]                                            # (B, P, 20)

    r3 = RELATION_SIZE * 3
    ent = out[..., :2]
    head = out[..., 2:2 + r3].reshape(B, P, RELATION_SIZE, 3).transpose(0, 2, 1, 3)
    tail = out[..., 2 + r3:].reshape(B, P, RELATION_SIZE, 3).transpose(0, 2, 1, 3)
    return ent, head, tail


def tplinker_forward_ref(params, input_ids, attention_mask, token_type_ids):
    """Pure-JAX reference mirroring the PyTorch forward literally."""
    B, L = input_ids.shape
    h = encoder_stub(params, input_ids, attention_mask, token_type_ids)
    shaking_list = []
    for ind in range(L):
        hidden_each = h[:, ind, :]
        visible = h[:, ind:, :]
        repeat = jnp.broadcast_to(hidden_each[:, None, :], (B, L - ind, HIDDEN))
        cat = jnp.concatenate([repeat, visible], axis=-1)
        shaking_list.append(jnp.tanh(cat @ params["_w_comb"].T + params["_b_comb"]))
    shaking = jnp.concatenate(shaking_list, axis=1)                        # (B, P, H)
    ent = shaking @ params["_w_ent"].T + params["_b_ent"]
    heads = jnp.stack([shaking @ params["_w_head"][r].T + params["_b_head"][r]
                       for r in range(RELATION_SIZE)], axis=1)
    tails = jnp.stack([shaking @ params["_w_tail"][r].T + params["_b_tail"][r]
                       for r in range(RELATION_SIZE)], axis=1)
    return ent, heads, tails


if __name__ == "__main__":
    key = jax.random.PRNGKey(0)
    kp, k1, k2 = jax.random.split(key, 3)
    params = init_params(kp)

    input_ids = jax.random.randint(k1, (BATCH, SEQ_LEN), 0, VOCAB, jnp.int32)
    token_type_ids = jax.random.randint(k2, (BATCH, SEQ_LEN), 0, TYPE_VOCAB, jnp.int32)
    attention_mask = jnp.ones((BATCH, SEQ_LEN), jnp.int32)

    ent, head, tail = tplinker_forward(params, input_ids, attention_mask, token_type_ids)
    jax.block_until_ready((ent, head, tail))

    ent_r, head_r, tail_r = tplinker_forward_ref(params, input_ids, attention_mask,
                                                 token_type_ids)

    P = SEQ_LEN * (SEQ_LEN + 1) // 2
    assert ent.shape == (BATCH, P, 2)
    assert head.shape == (BATCH, RELATION_SIZE, P, 3)
    assert tail.shape == (BATCH, RELATION_SIZE, P, 3)
    assert jnp.allclose(ent, ent_r, rtol=1e-5, atol=2e-5)
    assert jnp.allclose(head, head_r, rtol=1e-5, atol=2e-5)
    assert jnp.allclose(tail, tail_r, rtol=1e-5, atol=2e-5)

    print("KERNEL_OK")
</pallas_src>

<mosaic_0001>
module attributes {stable_mosaic.version = 11 : i64} {
  func.func @tplinker_fused_kernel(%arg0: i32, %arg1: memref<1x8x32xf32, #tpu.memory_space<vmem>>, %arg2: memref<32x64xf32, #tpu.memory_space<vmem>>, %arg3: memref<1x32xf32, #tpu.memory_space<vmem>>, %arg4: memref<40x8xf32, #tpu.memory_space<vmem>>, %arg5: memref<40x8xf32, #tpu.memory_space<vmem>>, %arg6: memref<32x128xf32, #tpu.memory_space<vmem>>, %arg7: memref<1x128xf32, #tpu.memory_space<vmem>>, %arg8: memref<1x40x128xf32, #tpu.memory_space<vmem>>) attributes {dimension_semantics = [#tpu.dimension_semantics<parallel>], iteration_bounds = array<i64: 2>, scalar_prefetch = 0 : i64, scratch_operands = 0 : i64, tpu.core_type = #tpu.core_type<tc>, window_params = [{transform_indices = @transform_0, window_bounds = array<i64: 1, 8, 32>}, {pipeline_mode = #tpu.pipeline_mode<synchronous>, transform_indices = @transform_1, window_bounds = array<i64: 32, 64>}, {pipeline_mode = #tpu.pipeline_mode<synchronous>, transform_indices = @transform_2, window_bounds = array<i64: 1, 32>}, {pipeline_mode = #tpu.pipeline_mode<synchronous>, transform_indices = @transform_3, window_bounds = array<i64: 40, 8>}, {pipeline_mode = #tpu.pipeline_mode<synchronous>, transform_indices = @transform_4, window_bounds = array<i64: 40, 8>}, {pipeline_mode = #tpu.pipeline_mode<synchronous>, transform_indices = @transform_5, window_bounds = array<i64: 32, 128>}, {pipeline_mode = #tpu.pipeline_mode<synchronous>, transform_indices = @transform_6, window_bounds = array<i64: 1, 128>}, {transform_indices = @transform_7, window_bounds = array<i64: 1, 40, 128>}]} {
    %c0 = arith.constant 0 : index
    %c0_0 = arith.constant 0 : index
    %c0_1 = arith.constant 0 : index
    %0 = vector.load %arg1[%c0, %c0_0, %c0_1] : memref<1x8x32xf32, #tpu.memory_space<vmem>>, vector<1x8x32xf32>
    %1 = vector.shape_cast %0 : vector<1x8x32xf32> to vector<8x32xf32>
    %c0_2 = arith.constant 0 : index
    %c0_3 = arith.constant 0 : index
    %2 = vector.load %arg2[%c0_2, %c0_3] : memref<32x64xf32, #tpu.memory_space<vmem>>, vector<32x64xf32>
    %cst = arith.constant dense<0.000000e+00> : vector<8x64xf32>
    %3 = tpu.matmul %1, %2, %cst {dimension_numbers = #tpu.dot_dimension_numbers<[1], [0], [0], [1], [0, 0, 1, 1], [], []>} : vector<8x32xf32>, vector<32x64xf32>, vector<8x64xf32> -> vector<8x64xf32>
    %4 = vector.extract_strided_slice %3 {offsets = [0, 0], sizes = [8, 32], strides = [1, 1]} : vector<8x64xf32> to vector<8x32xf32>
    %5 = vector.extract_strided_slice %3 {offsets = [0, 32], sizes = [8, 32], strides = [1, 1]} : vector<8x64xf32> to vector<8x32xf32>
    %c0_4 = arith.constant 0 : index
    %c0_5 = arith.constant 0 : index
    %6 = vector.load %arg3[%c0_4, %c0_5] : memref<1x32xf32, #tpu.memory_space<vmem>>, vector<1x32xf32>
    %7 = vector.broadcast %6 : vector<1x32xf32> to vector<8x32xf32>
    %8 = arith.addf %5, %7 : vector<8x32xf32>
    %c0_6 = arith.constant 0 : index
    %c0_7 = arith.constant 0 : index
    %9 = vector.load %arg4[%c0_6, %c0_7] : memref<40x8xf32, #tpu.memory_space<vmem>>, vector<40x8xf32>
    %cst_8 = arith.constant dense<0.000000e+00> : vector<40x32xf32>
    %10 = tpu.matmul %9, %4, %cst_8 {dimension_numbers = #tpu.dot_dimension_numbers<[1], [0], [0], [1], [0, 0, 1, 1], [], []>} : vector<40x8xf32>, vector<8x32xf32>, vector<40x32xf32> -> vector<40x32xf32>
    %c0_9 = arith.constant 0 : index
    %c0_10 = arith.constant 0 : index
    %11 = vector.load %arg5[%c0_9, %c0_10] : memref<40x8xf32, #tpu.memory_space<vmem>>, vector<40x8xf32>
    %cst_11 = arith.constant dense<0.000000e+00> : vector<40x32xf32>
    %12 = tpu.matmul %11, %8, %cst_11 {dimension_numbers = #tpu.dot_dimension_numbers<[1], [0], [0], [1], [0, 0, 1, 1], [], []>} : vector<40x8xf32>, vector<8x32xf32>, vector<40x32xf32> -> vector<40x32xf32>
    %13 = arith.addf %10, %12 : vector<40x32xf32>
    %14 = math.tanh %13 : vector<40x32xf32>
    %c0_12 = arith.constant 0 : index
    %c0_13 = arith.constant 0 : index
    %15 = vector.load %arg6[%c0_12, %c0_13] : memref<32x128xf32, #tpu.memory_space<vmem>>, vector<32x128xf32>
    %cst_14 = arith.constant dense<0.000000e+00> : vector<40x128xf32>
    %16 = tpu.matmul %14, %15, %cst_14 {dimension_numbers = #tpu.dot_dimension_numbers<[1], [0], [0], [1], [0, 0, 1, 1], [], []>} : vector<40x32xf32>, vector<32x128xf32>, vector<40x128xf32> -> vector<40x128xf32>
    %c0_15 = arith.constant 0 : index
    %c0_16 = arith.constant 0 : index
    %17 = vector.load %arg7[%c0_15, %c0_16] : memref<1x128xf32, #tpu.memory_space<vmem>>, vector<1x128xf32>
    %18 = vector.broadcast %17 : vector<1x128xf32> to vector<40x128xf32>
    %19 = arith.addf %16, %18 : vector<40x128xf32>
    %c0_17 = arith.constant 0 : index
    %c0_18 = arith.constant 0 : index
    %c0_19 = arith.constant 0 : index
    %20 = vector.load %arg8[%c0_17, %c0_18, %c0_19] : memref<1x40x128xf32, #tpu.memory_space<vmem>>, vector<1x40x128xf32>
    %21 = vector.shape_cast %20 : vector<1x40x128xf32> to vector<40x128xf32>
    %22 = vector.shape_cast %19 : vector<40x128xf32> to vector<1x40x128xf32>
    tpu.vector_store %arg8[%c0_17, %c0_18, %c0_19], %22 {strides = array<i32>} : memref<1x40x128xf32, #tpu.memory_space<vmem>>, vector<1x40x128xf32>,
    return
  }
  func.func @transform_0(%arg0: i32) -> (i32, i32, i32) {
    %c0_i32 = arith.constant 0 : i32
    %c0_i32_0 = arith.constant 0 : i32
    %c0_i32_1 = arith.constant 0 : i32
    return %arg0, %c0_i32, %c0_i32_0 : i32, i32, i32
  }
  func.func @transform_1(%arg0: i32) -> (i32, i32) {
    %c0_i32 = arith.constant 0 : i32
    %c0_i32_0 = arith.constant 0 : i32
    %c0_i32_1 = arith.constant 0 : i32
    return %c0_i32, %c0_i32_0 : i32, i32
  }
  func.func @transform_2(%arg0: i32) -> (i32, i32) {
    %c0_i32 = arith.constant 0 : i32
    %c0_i32_0 = arith.constant 0 : i32
    %c0_i32_1 = arith.constant 0 : i32
    return %c0_i32, %c0_i32_0 : i32, i32
  }
  func.func @transform_3(%arg0: i32) -> (i32, i32) {
    %c0_i32 = arith.constant 0 : i32
    %c0_i32_0 = arith.constant 0 : i32
    %c0_i32_1 = arith.constant 0 : i32
    return %c0_i32, %c0_i32_0 : i32, i32
  }
  func.func @transform_4(%arg0: i32) -> (i32, i32) {
    %c0_i32 = arith.constant 0 : i32
    %c0_i32_0 = arith.constant 0 : i32
    %c0_i32_1 = arith.constant 0 : i32
    return %c0_i32, %c0_i32_0 : i32, i32
  }
  func.func @transform_5(%arg0: i32) -> (i32, i32) {
    %c0_i32 = arith.constant 0 : i32
    %c0_i32_0 = arith.constant 0 : i32
    %c0_i32_1 = arith.constant 0 : i32
    return %c0_i32, %c0_i32_0 : i32, i32
  }
  func.func @transform_6(%arg0: i32) -> (i32, i32) {
    %c0_i32 = arith.constant 0 : i32
    %c0_i32_0 = arith.constant 0 : i32
    %c0_i32_1 = arith.constant 0 : i32
    return %c0_i32, %c0_i32_0 : i32, i32
  }
  func.func @transform_7(%arg0: i32) -> (i32, i32, i32) {
    %c0_i32 = arith.constant 0 : i32
    %c0_i32_0 = arith.constant 0 : i32
    %c0_i32_1 = arith.constant 0 : i32
    return %arg0, %c0_i32, %c0_i32_0 : i32, i32, i32
  }
}

</mosaic_0001>

<llo_original>
// kernel: tpu_custom_call.1
$region0: #{tpu_custom_call.1}
  #allocation0 [shape = 'u32[]', space=smem, size = 0x4, offset = 0x4, fixed_abs, tag = 'smem constant byte address 0x4 - core index']
  #allocation1 [shape = 'u32[144,128]{1,0:T(1,128)}', space=vmem, size = 0x12000, scoped, tag = 'internal scratch']
  %s0 = inlined_call_operand.vmem [shape: f32[2,8,32], index: 0, kind: input, shape index: {}]
  %s1 = inlined_call_operand.vmem [shape: f32[32,64], index: 1, kind: input, shape index: {}]
  %s2 = inlined_call_operand.vmem [shape: f32[1,32], index: 2, kind: input, shape index: {}]
  %s3 = inlined_call_operand.vmem [shape: f32[40,8], index: 3, kind: input, shape index: {}]
  %s4 = inlined_call_operand.vmem [shape: f32[40,8], index: 4, kind: input, shape index: {}]
  %s5 = inlined_call_operand.vmem [shape: f32[32,128], index: 5, kind: input, shape index: {}]
  %s6 = inlined_call_operand.vmem [shape: f32[1,128], index: 6, kind: input, shape index: {}]
  %s7 = inlined_call_operand.hbm [shape: f32[2,40,128], index: 7, kind: output, shape index: {}]
  %s8 = sld [smem:[#allocation0]]
  $region61: #{tpu_custom_call.1} parent=0
    _
  %s10 = ssub.s32 1, %s8
  %s11 = scalar_select 0, %s10, %s8
  $region1: #{tpu_custom_call.1} parent=0
    #allocation2 [shape = 'u8[40960]{0}', space=vmem, size = 0xa000, scoped, tag = 'output window, operand 0']
    #allocation3 [shape = 's32[2]{0}', space=sflag, size = 0x8, scoped, tag = 'scoped memory for tpu_custom_call.1']
    %12 = vsyncpa [#allocation3], 0
    %s13 = scalar_lea.sflag [#allocation3], 1
    %14 = vsyncpa %s13, 0
    loop: start=0, step=1, limit=4
    $region2: #{tpu_custom_call.1} parent=1 // loop_pre_header
      _
    $region3: #{tpu_custom_call.1} parent=1 // loop_header
      %s16 = sphi 0, %s20
      %p17 = scmp.ge.s32.totalorder %s16, 4
      %s26 = sphi 0, %s28
      %s29 = sphi 0, %s26
      %s30 = sphi 0, %s29
      %s46 = sphi 0, %s30
      %s50 = sphi 0, %s50
      %s52 = sphi 0, %s50
      %s53 = sphi 0, %s52
      %s67 = sphi 0, %s53
      %s71 = sphi 0, %s71
      %s73 = sphi 0, %s71
      %s74 = sphi 0, %s73
      %s88 = sphi 0, %s74
      %s92 = sphi 0, %s92
      %s94 = sphi 0, %s92
      %s95 = sphi 0, %s94
      %s109 = sphi 0, %s95
      %s113 = sphi 0, %s113
      %s115 = sphi 0, %s113
      %s116 = sphi 0, %s115
      %s130 = sphi 0, %s116
      %s134 = sphi 0, %s134
      %s136 = sphi 0, %s134
      %s137 = sphi 0, %s136
      %s151 = sphi 0, %s137
      %s155 = sphi 0, %s155
      %s157 = sphi 0, %s155
      %s158 = sphi 0, %s157
      %s172 = sphi 0, %s158
      %s178 = sphi 0, %s180
      %s181 = sphi 0, %s178
      %s182 = sphi 0, %s181
      %s198 = sphi 0, %s182
    $region4: #{tpu_custom_call.1} parent=1 // loop_header_branch
      %19 = sbr.rel (%p17) target = $region8
    $region5: #{tpu_custom_call.1} parent=1 // loop_body
      %s21 = ssub.s32 %s16, 1
      %s22 = ssub.s32 %s16, 2
      %s23 = sadd.s32 %s16, 1
      %s24 = ssub.s32 %s16, %s23
      %p25 = scmp.eq.s32.totalorder %s24, 0
      %s27 = sadd.s32 %s26, 1
      %s28 = scalar_select %p25, %s26, %s27
      %p31 = pneg %p25
      %p32 = scmp.eq.s32.totalorder %s16, 1
      %p33 = por %p31, %p32
      %p34 = scmp.ne.s32.totalorder %s26, %s29
      %p35 = scmp.eq.s32.totalorder %s16, 0
      %p36 = por %p34, %p35
      %p37 = scmp.ne.s32.totalorder %s26, %s29
      %p38 = scmp.eq.s32.totalorder %s21, 1
      %p39 = por %p37, %p38
      %p40 = scmp.ne.s32.totalorder %s29, %s30
      %p41 = scmp.eq.s32.totalorder %s21, 0
      %p42 = por %p40, %p41
      %p43 = scmp.ne.s32.totalorder %s29, %s30
      %p44 = scmp.eq.s32.totalorder %s22, 1
      %p45 = por %p43, %p44
      %p47 = scmp.ne.s32.totalorder %s30, %s46
      %p48 = scmp.eq.s32.totalorder %s22, 0
      %p49 = por %p47, %p48
      %s51 = sadd.s32 %s50, 1
      %p54 = scmp.eq.s32.totalorder %s16, 1
      %p55 = scmp.ne.s32.totalorder %s50, %s52
      %p56 = scmp.eq.s32.totalorder %s16, 0
      %p57 = por %p55, %p56
      %p58 = scmp.ne.s32.totalorder %s50, %s52
      %p59 = scmp.eq.s32.totalorder %s21, 1
      %p60 = por %p58, %p59
      %p61 = scmp.ne.s32.totalorder %s52, %s53
      %p62 = scmp.eq.s32.totalorder %s21, 0
      %p63 = por %p61, %p62
      %p64 = scmp.ne.s32.totalorder %s52, %s53
      %p65 = scmp.eq.s32.totalorder %s22, 1
      %p66 = por %p64, %p65
      %p68 = scmp.ne.s32.totalorder %s53, %s67
      %p69 = scmp.eq.s32.totalorder %s22, 0
      %p70 = por %p68, %p69
      %s72 = sadd.s32 %s71, 1
      %p75 = scmp.eq.s32.totalorder %s16, 1
      %p76 = scmp.ne.s32.totalorder %s71, %s73
      %p77 = scmp.eq.s32.totalorder %s16, 0
      %p78 = por %p76, %p77
      %p79 = scmp.ne.s32.totalorder %s71, %s73
      %p80 = scmp.eq.s32.totalorder %s21, 1
      %p81 = por %p79, %p80
      %p82 = scmp.ne.s32.totalorder %s73, %s74
      %p83 = scmp.eq.s32.totalorder %s21, 0
      %p84 = por %p82, %p83
      %p85 = scmp.ne.s32.totalorder %s73, %s74
      %p86 = scmp.eq.s32.totalorder %s22, 1
      %p87 = por %p85, %p86
      %p89 = scmp.ne.s32.totalorder %s74, %s88
      %p90 = scmp.eq.s32.totalorder %s22, 0
      %p91 = por %p89, %p90
      %s93 = sadd.s32 %s92, 1
      %p96 = scmp.eq.s32.totalorder %s16, 1
      %p97 = scmp.ne.s32.totalorder %s92, %s94
      %p98 = scmp.eq.s32.totalorder %s16, 0
      %p99 = por %p97, %p98
      %p100 = scmp.ne.s32.totalorder %s92, %s94
      %p101 = scmp.eq.s32.totalorder %s21, 1
      %p102 = por %p100, %p101
      %p103 = scmp.ne.s32.totalorder %s94, %s95
      %p104 = scmp.eq.s32.totalorder %s21, 0
      %p105 = por %p103, %p104
      %p106 = scmp.ne.s32.totalorder %s94, %s95
      %p107 = scmp.eq.s32.totalorder %s22, 1
      %p108 = por %p106, %p107
      %p110 = scmp.ne.s32.totalorder %s95, %s109
      %p111 = scmp.eq.s32.totalorder %s22, 0
      %p112 = por %p110, %p111
      %s114 = sadd.s32 %s113, 1
      %p117 = scmp.eq.s32.totalorder %s16, 1
      %p118 = scmp.ne.s32.totalorder %s113, %s115
      %p119 = scmp.eq.s32.totalorder %s16, 0
      %p120 = por %p118, %p119
      %p121 = scmp.ne.s32.totalorder %s113, %s115
      %p122 = scmp.eq.s32.totalorder %s21, 1
      %p123 = por %p121, %p122
      %p124 = scmp.ne.s32.totalorder %s115, %s116
      %p125 = scmp.eq.s32.totalorder %s21, 0
      %p126 = por %p124, %p125
      %p127 = scmp.ne.s32.totalorder %s115, %s116
      %p128 = scmp.eq.s32.totalorder %s22, 1
      %p129 = por %p127, %p128
      %p131 = scmp.ne.s32.totalorder %s116, %s130
      %p132 = scmp.eq.s32.totalorder %s22, 0
      %p133 = por %p131, %p132
      %s135 = sadd.s32 %s134, 1
      %p138 = scmp.eq.s32.totalorder %s16, 1
      %p139 = scmp.ne.s32.totalorder %s134, %s136
      %p140 = scmp.eq.s32.totalorder %s16, 0
      %p141 = por %p139, %p140
      %p142 = scmp.ne.s32.totalorder %s134, %s136
      %p143 = scmp.eq.s32.totalorder %s21, 1
      %p144 = por %p142, %p143
      %p145 = scmp.ne.s32.totalorder %s136, %s137
      %p146 = scmp.eq.s32.totalorder %s21, 0
      %p147 = por %p145, %p146
      %p148 = scmp.ne.s32.totalorder %s136, %s137
      %p149 = scmp.eq.s32.totalorder %s22, 1
      %p150 = por %p148, %p149
      %p152 = scmp.ne.s32.totalorder %s137, %s151
      %p153 = scmp.eq.s32.totalorder %s22, 0
      %p154 = por %p152, %p153
      %s156 = sadd.s32 %s155, 1
      %p159 = scmp.eq.s32.totalorder %s16, 1
      %p160 = scmp.ne.s32.totalorder %s155, %s157
      %p161 = scmp.eq.s32.totalorder %s16, 0
      %p162 = por %p160, %p161
      %p163 = scmp.ne.s32.totalorder %s155, %s157
      %p164 = scmp.eq.s32.totalorder %s21, 1
      %p165 = por %p163, %p164
      %p166 = scmp.ne.s32.totalorder %s157, %s158
      %p167 = scmp.eq.s32.totalorder %s21, 0
      %p168 = por %p166, %p167
      %p169 = scmp.ne.s32.totalorder %s157, %s158
      %p170 = scmp.eq.s32.totalorder %s22, 1
      %p171 = por %p169, %p170
      %p173 = scmp.ne.s32.totalorder %s158, %s172
      %p174 = scmp.eq.s32.totalorder %s22, 0
      %p175 = por %p173, %p174
      %s176 = ssub.s32 %s16, %s23
      %p177 = scmp.eq.s32.totalorder %s176, 0
      %s179 = sadd.s32 %s178, 1
      %s180 = scalar_select %p177, %s178, %s179
      %p183 = pneg %p177
      %p184 = scmp.eq.s32.totalorder %s16, 1
      %p185 = por %p183, %p184
      %p186 = scmp.ne.s32.totalorder %s178, %s181
      %p187 = scmp.eq.s32.totalorder %s16, 0
      %p188 = por %p186, %p187
      %p189 = scmp.ne.s32.totalorder %s178, %s181
      %p190 = scmp.eq.s32.totalorder %s21, 1
      %p191 = por %p189, %p190
      %p192 = scmp.ne.s32.totalorder %s181, %s182
      %p193 = scmp.eq.s32.totalorder %s21, 0
      %p194 = por %p192, %p193
      %p195 = scmp.ne.s32.totalorder %s181, %s182
      %p196 = scmp.eq.s32.totalorder %s22, 1
      %p197 = por %p195, %p196
      %p199 = scmp.ne.s32.totalorder %s182, %s198
      %p200 = scmp.eq.s32.totalorder %s22, 0
      %p201 = por %p199, %p200
      %p202 = scmp.le.s32.totalorder 1, %s16
      %p203 = scmp.lt.s32.totalorder %s16, 3
      %p204 = pnand %p202, %p203
      %p205 = pneg %p204
      // Predicated region
      $region9: #{tpu_custom_call.1} parent=5 // pred_check
        _
      $region10: #{tpu_custom_call.1} parent=5 // pred_check_branch
        %207 = sbr.rel (%p204) target = $region12
      $region11: #{tpu_custom_call.1} parent=5 // pred_region
        %s208 = ssub.s32 %s16, 1
        // Predicated region
        $region13: #{tpu_custom_call.1} parent=11 // pred_check
          %p209 = pneg %p63
        $region14: #{tpu_custom_call.1} parent=11 // pred_check_branch
          %211 = sbr.rel (%p209) target = $region16
        $region15: #{tpu_custom_call.1} parent=11 // pred_region
          _
        $region16: #{tpu_custom_call.1} parent=11 // pred_fallthru
          _
        // Predicated region
        $region17: #{tpu_custom_call.1} parent=11 // pred_check
          %p212 = pneg %p84
        $region18: #{tpu_custom_call.1} parent=11 // pred_check_branch
          %214 = sbr.rel (%p212) target = $region20
        $region19: #{tpu_custom_call.1} parent=11 // pred_region
          _
        $region20: #{tpu_custom_call.1} parent=11 // pred_fallthru
          _
        // Predicated region
        $region21: #{tpu_custom_call.1} parent=11 // pred_check
          %p215 = pneg %p105
        $region22: #{tpu_custom_call.1} parent=11 // pred_check_branch
          %217 = sbr.rel (%p215) target = $region24
        $region23: #{tpu_custom_call.1} parent=11 // pred_region
          _
        $region24: #{tpu_custom_call.1} parent=11 // pred_fallthru
          _
        // Predicated region
        $region25: #{tpu_custom_call.1} parent=11 // pred_check
          %p218 = pneg %p126
        $region26: #{tpu_custom_call.1} parent=11 // pred_check_branch
          %220 = sbr.rel (%p218) target = $region28
        $region27: #{tpu_custom_call.1} parent=11 // pred_region
          _
        $region28: #{tpu_custom_call.1} parent=11 // pred_fallthru
          _
        // Predicated region
        $region29: #{tpu_custom_call.1} parent=11 // pred_check
          %p221 = pneg %p147
        $region30: #{tpu_custom_call.1} parent=11 // pred_check_branch
          %223 = sbr.rel (%p221) target = $region32
        $region31: #{tpu_custom_call.1} parent=11 // pred_region
          _
        $region32: #{tpu_custom_call.1} parent=11 // pred_fallthru
          _
        // Predicated region
        $region33: #{tpu_custom_call.1} parent=11 // pred_check
          %p224 = pneg %p168
        $region34: #{tpu_custom_call.1} parent=11 // pred_check_branch
          %226 = sbr.rel (%p224) target = $region36
        $region35: #{tpu_custom_call.1} parent=11 // pred_region
          _
        $region36: #{tpu_custom_call.1} parent=11 // pred_fallthru
          _
      $region12: #{tpu_custom_call.1} parent=5 // pred_fallthru
        _
      %p227 = scmp.lt.s32.totalorder %s16, 2
      // Predicated region
      $region37: #{tpu_custom_call.1} parent=5 // pred_check
        %p228 = pneg %p227
      $region38: #{tpu_custom_call.1} parent=5 // pred_check_branch
        %230 = sbr.rel (%p228) target = $region40
      $region39: #{tpu_custom_call.1} parent=5 // pred_region
        // Predicated region
        $region41: #{tpu_custom_call.1} parent=39 // pred_check
          %p231 = pneg %p36
        $region42: #{tpu_custom_call.1} parent=39 // pred_check_branch
          %233 = sbr.rel (%p231) target = $region44
        $region43: #{tpu_custom_call.1} parent=39 // pred_region
          %p234 = scmp.lt.s32.totalorder %s16, 1
          %s235 = scalar_select %p234, %s16, 1
          %s236 = smul.addr %s235, 8
          %s237 = scalar_lea.vmem %s0, %s236
        $region44: #{tpu_custom_call.1} parent=39 // pred_fallthru
          _
      $region40: #{tpu_custom_call.1} parent=5 // pred_fallthru
        _
      %p238 = scmp.le.s32.totalorder 1, %s16
      %p239 = scmp.lt.s32.totalorder %s16, 3
      %p240 = pnand %p238, %p239
      %p241 = pneg %p240
      // Predicated region
      $region45: #{tpu_custom_call.1} parent=5 // pred_check
        _
      $region46: #{tpu_custom_call.1} parent=5 // pred_check_branch
        %243 = sbr.rel (%p240) target = $region48
      $region47: #{tpu_custom_call.1} parent=5 // pred_region
        %s244 = ssub.s32 %s16, 1
        %p245 = scmp.lt.s32.totalorder %s21, 1
        %s246 = scalar_select %p245, %s21, 1
        %s247 = smul.addr %s246, 8
        %s248 = scalar_lea.vmem %s0, %s247
        %p249 = pneg %p42
        %p250 = pneg %p39
        %p251 = pneg %p63
        %p252 = pneg %p60
        %p253 = pneg %p84
        %p254 = pneg %p81
        %p255 = pneg %p105
        %p256 = pneg %p102
        %p257 = pneg %p126
        %p258 = pneg %p123
        %p259 = pneg %p147
        %p260 = pneg %p144
        %p261 = pneg %p168
        %p262 = pneg %p165
        %p263 = pneg %p194
        %p264 = pneg %p191
        %s265 = sand.u32 %s181, 1
        %s266 = scalar_lea.sflag [#allocation3], %s265
        %s267 = sand.u32 %s181, 1
        %s268 = smul.addr %s267, 40
        %s269 = scalar_lea.vmem [#allocation2], %s268
        %p270 = scmp.lt.s32.totalorder %s21, 1
        %s271 = scalar_select %p270, %s21, 1
        %s272 = smul.addr %s271, 8
        %s273 = scalar_lea.vmem %s0, %s272
        %v274 = vld [vmem:[%s273] sm:$0xff]
        %v275 = vld [vmem:[%s1] sm:$0xff]
        %v276 = vld [vmem:[%s1 + $0x8] sm:$0xff]
        %v277 = vld [vmem:[%s1 + $0x10] sm:$0xff]
        %v278 = vld [vmem:[%s1 + $0x18] sm:$0xff]
        %vm279 = vcmask 261120
        %v281 = vsel %vm279, %v274, 0
        %283 = vmatprep.subr.mxu0 0.0
        %284 = vmatpush1.msra.mxu0 0.0
        %285 = vmatprep.subr.mxu0 0.0
        %286 = vmatpush1.msra.mxu0 0.0
        %287 = vmatprep.subr.mxu0 0.0
        %288 = vmatpush1.msra.mxu0 0.0
        %289 = vmatprep.subr.mxu0 0.0
        %290 = vmatpush1.msra.mxu0 0.0
        %291 = vmatprep.subr.mxu0 0.0
        %292 = vmatpush1.msra.mxu0 0.0
        %293 = vmatprep.subr.mxu0 0.0
        %294 = vmatpush1.msra.mxu0 0.0
        %295 = vmatprep.subr.mxu0 0.0
        %296 = vmatpush1.msra.mxu0 0.0
        %297 = vmatprep.subr.mxu0 0.0
        %298 = vmatpush1.msra.mxu0 0.0
        %299 = vmatprep.subr.mxu0 0.0
        %300 = vmatpush1.msra.mxu0 0.0
        %301 = vmatprep.subr.mxu0 0.0
        %302 = vmatpush1.msra.mxu0 0.0
        %303 = vmatprep.subr.mxu0 0.0
        %304 = vmatpush1.msra.mxu0 0.0
        %305 = vmatprep.subr.mxu0 0.0
        %306 = vmatpush1.msra.mxu0 0.0
        %307 = vmatprep.subr.mxu0 0.0
        %308 = vmatpush1.msra.mxu0 %v278
        %309 = vmatprep.subr.mxu0 0.0
        %310 = vmatpush1.msra.mxu0 %v277
        %311 = vmatprep.subr.mxu0 0.0
        %312 = vmatpush1.msra.mxu0 %v276
        %313 = vmatprep.subr.mxu0 0.0
        %314 = vmatpush1.msra.mxu0 %v275
        %315 = vmatprep.subr.mxu0 0.0
        %316 = vmatpush2.msra.mxu0 0.0
        %317 = vmatprep.subr.mxu0 0.0
        %318 = vmatpush2.msra.mxu0 0.0
        %319 = vmatprep.subr.mxu0 0.0
        %320 = vmatpush2.msra.mxu0 0.0
        %321 = vmatprep.subr.mxu0 0.0
        %322 = vmatpush2.msra.mxu0 0.0
        %323 = vmatprep.subr.mxu0 0.0
        %324 = vmatpush2.msra.mxu0 0.0
        %325 = vmatprep.subr.mxu0 0.0
        %326 = vmatpush2.msra.mxu0 0.0
        %327 = vmatprep.subr.mxu0 0.0
        %328 = vmatpush2.msra.mxu0 0.0
        %329 = vmatprep.subr.mxu0 0.0
        %330 = vmatpush2.msra.mxu0 0.0
        %331 = vmatprep.subr.mxu0 0.0
        %332 = vmatpush2.msra.mxu0 0.0
        %333 = vmatprep.subr.mxu0 0.0
        %334 = vmatpush2.msra.mxu0 0.0
        %335 = vmatprep.subr.mxu0 0.0
        %336 = vmatpush2.msra.mxu0 0.0
        %337 = vmatprep.subr.mxu0 0.0
        %338 = vmatpush2.msra.mxu0 0.0
        %339 = vmatprep.subr.mxu0 0.0
        %340 = vmatpush2.msra.mxu0 0.0
        %341 = vmatprep.subr.mxu0 0.0
        %342 = vmatpush2.msra.mxu0 0.0
        %343 = vmatprep.subr.mxu0 0.0
        %344 = vmatpush2.msra.mxu0 0.0
        %345 = vmatprep.subr.mxu0 0.0
        %346 = vmatpush2.msra.mxu0 0.0
        %347 = vmatprep.mubr.f32.mxu0 0.0
        %348 = vmatmul.mubr.f32.gmra.mxu0 %v281
        %v349 = vpop.f32.mrf.mxu0
        %v350 = vadd.f32 0.0, %v349
        %v351 = vpop.f32.mrf.mxu0
        %352 = vdwg.mxu0
        %v353 = vld [vmem:[%s2] sm:$0x1]
        %v355 = vlaneseq
        %v356 = vshrl.u32 %v355, 7
        %v357 = vsub.s32 0, %v356
        %v358 = vrot.slane %v353, %v357
        %359 = vrot.lane.b32.xlu0 %v358, 32
        %v360 = vpop.permute.xlu0 %359
        %v362 = vadd.f32 %v350, %v360
        %v363 = vld [vmem:[%s3] sm:$0xff]
        %v364 = vld [vmem:[%s3 + $0x8] sm:$0xff]
        %v365 = vld [vmem:[%s3 + $0x10] sm:$0xff]
        %v366 = vld [vmem:[%s3 + $0x18] sm:$0xff]
        %v367 = vld [vmem:[%s3 + $0x20] sm:$0xff]
        %v368 = vld [vmem:[%s4] sm:$0xff]
        %v369 = vld [vmem:[%s4 + $0x8] sm:$0xff]
        %v370 = vld [vmem:[%s4 + $0x10] sm:$0xff]
        %v371 = vld [vmem:[%s4 + $0x18] sm:$0xff]
        %v372 = vld [vmem:[%s4 + $0x20] sm:$0xff]
        %374 = vrot.lane.b32.xlu0 %v362, 96
        %v375 = vpop.permute.xlu0 %374
        %vm377 = vcmask 64512
        %v379 = vsel %vm377, %v368, 0
        %v382 = vsel %vm377, %v369, 0
        %v385 = vsel %vm377, %v370, 0
        %v388 = vsel %vm377, %v371, 0
        %v391 = vsel %vm377, %v372, 0
        %393 = vmatprep.subr.mxu0 0.0
        %394 = vmatpush1.msra.mxu0 0.0
        %395 = vmatprep.subr.mxu0 0.0
        %396 = vmatpush1.msra.mxu0 0.0
        %397 = vmatprep.subr.mxu0 0.0
        %398 = vmatpush1.msra.mxu0 0.0
        %399 = vmatprep.subr.mxu0 0.0
        %400 = vmatpush1.msra.mxu0 0.0
        %401 = vmatprep.subr.mxu0 0.0
        %402 = vmatpush1.msra.mxu0 0.0
        %403 = vmatprep.subr.mxu0 0.0
        %404 = vmatpush1.msra.mxu0 0.0
        %405 = vmatprep.subr.mxu0 0.0
        %406 = vmatpush1.msra.mxu0 0.0
        %407 = vmatprep.subr.mxu0 0.0
        %408 = vmatpush1.msra.mxu0 0.0
        %409 = vmatprep.subr.mxu0 0.0
        %410 = vmatpush1.msra.mxu0 0.0
        %411 = vmatprep.subr.mxu0 0.0
        %412 = vmatpush1.msra.mxu0 0.0
        %413 = vmatprep.subr.mxu0 0.0
        %414 = vmatpush1.msra.mxu0 0.0
        %415 = vmatprep.subr.mxu0 0.0
        %416 = vmatpush1.msra.mxu0 0.0
        %417 = vmatprep.subr.mxu0 0.0
        %418 = vmatpush1.msra.mxu0 0.0
        %419 = vmatprep.subr.mxu0 0.0
        %420 = vmatpush1.msra.mxu0 0.0
        %421 = vmatprep.subr.mxu0 0.0
        %422 = vmatpush1.msra.mxu0 0.0
        %423 = vmatprep.subr.mxu0 0.0
        %424 = vmatpush1.msra.mxu0 %v375
        %425 = vmatprep.subr.mxu0 0.0
        %426 = vmatpush2.msra.mxu0 0.0
        %427 = vmatprep.subr.mxu0 0.0
        %428 = vmatpush2.msra.mxu0 0.0
        %429 = vmatprep.subr.mxu0 0.0
        %430 = vmatpush2.msra.mxu0 0.0
        %431 = vmatprep.subr.mxu0 0.0
        %432 = vmatpush2.msra.mxu0 0.0
        %433 = vmatprep.subr.mxu0 0.0
        %434 = vmatpush2.msra.mxu0 0.0
        %435 = vmatprep.subr.mxu0 0.0
        %436 = vmatpush2.msra.mxu0 0.0
        %437 = vmatprep.subr.mxu0 0.0
        %438 = vmatpush2.msra.mxu0 0.0
        %439 = vmatprep.subr.mxu0 0.0
        %440 = vmatpush2.msra.mxu0 0.0
        %441 = vmatprep.subr.mxu0 0.0
        %442 = vmatpush2.msra.mxu0 0.0
        %443 = vmatprep.subr.mxu0 0.0
        %444 = vmatpush2.msra.mxu0 0.0
        %445 = vmatprep.subr.mxu0 0.0
        %446 = vmatpush2.msra.mxu0 0.0
        %447 = vmatprep.subr.mxu0 0.0
        %448 = vmatpush2.msra.mxu0 0.0
        %449 = vmatprep.subr.mxu0 0.0
        %450 = vmatpush2.msra.mxu0 0.0
        %451 = vmatprep.subr.mxu0 0.0
        %452 = vmatpush2.msra.mxu0 0.0
        %453 = vmatprep.subr.mxu0 0.0
        %454 = vmatpush2.msra.mxu0 0.0
        %455 = vmatprep.subr.mxu0 0.0
        %456 = vmatpush2.msra.mxu0 0.0
        %457 = vmatprep.mubr.f32.mxu0 0.0
        %458 = vmatmul.mubr.f32.gmra.mxu0 %v379
        %v459 = vpop.f32.mrf.mxu0
        %v460 = vadd.f32 0.0, %v459
        %v461 = vpop.f32.mrf.mxu0
        %462 = vmatprep.mubr.f32.mxu0 0.0
        %463 = vmatmul.mubr.f32.gmra.mxu0 %v382
        %v464 = vpop.f32.mrf.mxu0
        %v465 = vadd.f32 0.0, %v464
        %v466 = vpop.f32.mrf.mxu0
        %467 = vmatprep.mubr.f32.mxu0 0.0
        %468 = vmatmul.mubr.f32.gmra.mxu0 %v385
        %v469 = vpop.f32.mrf.mxu0
        %v470 = vadd.f32 0.0, %v469
        %v471 = vpop.f32.mrf.mxu0
        %472 = vmatprep.mubr.f32.mxu0 0.0
        %473 = vmatmul.mubr.f32.gmra.mxu0 %v388
        %v474 = vpop.f32.mrf.mxu0
        %v475 = vadd.f32 0.0, %v474
        %v476 = vpop.f32.mrf.mxu0
        %477 = vmatprep.mubr.f32.mxu0 0.0
        %478 = vmatmul.mubr.f32.gmra.mxu0 %v391
        %v479 = vpop.f32.mrf.mxu0
        %v480 = vadd.f32 0.0, %v479
        %v481 = vpop.f32.mrf.mxu0
        %482 = vdwg.mxu0
        %v484 = vsel %vm377, %v363, 0
        %v487 = vsel %vm377, %v364, 0
        %v490 = vsel %vm377, %v365, 0
        %v493 = vsel %vm377, %v366, 0
        %v496 = vsel %vm377, %v367, 0
        %498 = vmatprep.subr.mxu0 0.0
        %499 = vmatpush1.msra.mxu0 0.0
        %500 = vmatprep.subr.mxu0 0.0
        %501 = vmatpush1.msra.mxu0 0.0
        %502 = vmatprep.subr.mxu0 0.0
        %503 = vmatpush1.msra.mxu0 0.0
        %504 = vmatprep.subr.mxu0 0.0
        %505 = vmatpush1.msra.mxu0 0.0
        %506 = vmatprep.subr.mxu0 0.0
        %507 = vmatpush1.msra.mxu0 0.0
        %508 = vmatprep.subr.mxu0 0.0
        %509 = vmatpush1.msra.mxu0 0.0
        %510 = vmatprep.subr.mxu0 0.0
        %511 = vmatpush1.msra.mxu0 0.0
        %512 = vmatprep.subr.mxu0 0.0
        %513 = vmatpush1.msra.mxu0 0.0
        %514 = vmatprep.subr.mxu0 0.0
        %515 = vmatpush1.msra.mxu0 0.0
        %516 = vmatprep.subr.mxu0 0.0
        %517 = vmatpush1.msra.mxu0 0.0
        %518 = vmatprep.subr.mxu0 0.0
        %519 = vmatpush1.msra.mxu0 0.0
        %520 = vmatprep.subr.mxu0 0.0
        %521 = vmatpush1.msra.mxu0 0.0
        %522 = vmatprep.subr.mxu0 0.0
        %523 = vmatpush1.msra.mxu0 0.0
        %524 = vmatprep.subr.mxu0 0.0
        %525 = vmatpush1.msra.mxu0 0.0
        %526 = vmatprep.subr.mxu0 0.0
        %527 = vmatpush1.msra.mxu0 0.0
        %528 = vmatprep.subr.mxu0 0.0
        %529 = vmatpush1.msra.mxu0 %v350
        %530 = vmatprep.subr.mxu0 0.0
        %531 = vmatpush2.msra.mxu0 0.0
        %532 = vmatprep.subr.mxu0 0.0
        %533 = vmatpush2.msra.mxu0 0.0
        %534 = vmatprep.subr.mxu0 0.0
        %535 = vmatpush2.msra.mxu0 0.0
        %536 = vmatprep.subr.mxu0 0.0
        %537 = vmatpush2.msra.mxu0 0.0
        %538 = vmatprep.subr.mxu0 0.0
        %539 = vmatpush2.msra.mxu0 0.0
        %540 = vmatprep.subr.mxu0 0.0
        %541 = vmatpush2.msra.mxu0 0.0
        %542 = vmatprep.subr.mxu0 0.0
        %543 = vmatpush2.msra.mxu0 0.0
        %544 = vmatprep.subr.mxu0 0.0
        %545 = vmatpush2.msra.mxu0 0.0
        %546 = vmatprep.subr.mxu0 0.0
        %547 = vmatpush2.msra.mxu0 0.0
        %548 = vmatprep.subr.mxu0 0.0
        %549 = vmatpush2.msra.mxu0 0.0
        %550 = vmatprep.subr.mxu0 0.0
        %551 = vmatpush2.msra.mxu0 0.0
        %552 = vmatprep.subr.mxu0 0.0
        %553 = vmatpush2.msra.mxu0 0.0
        %554 = vmatprep.subr.mxu0 0.0
        %555 = vmatpush2.msra.mxu0 0.0
        %556 = vmatprep.subr.mxu0 0.0
        %557 = vmatpush2.msra.mxu0 0.0
        %558 = vmatprep.subr.mxu0 0.0
        %559 = vmatpush2.msra.mxu0 0.0
        %560 = vmatprep.subr.mxu0 0.0
        %561 = vmatpush2.msra.mxu0 0.0
        %562 = vmatprep.mubr.f32.mxu0 0.0
        %563 = vmatmul.mubr.f32.gmra.mxu0 %v484
        %v564 = vpop.f32.mrf.mxu0
        %v565 = vadd.f32 %v460, %v564
        %v566 = vpop.f32.mrf.mxu0
        %567 = vmatprep.mubr.f32.mxu0 0.0
        %568 = vmatmul.mubr.f32.gmra.mxu0 %v487
        %v569 = vpop.f32.mrf.mxu0
        %v570 = vadd.f32 %v465, %v569
        %v571 = vpop.f32.mrf.mxu0
        %572 = vmatprep.mubr.f32.mxu0 0.0
        %573 = vmatmul.mubr.f32.gmra.mxu0 %v490
        %v574 = vpop.f32.mrf.mxu0
        %v575 = vadd.f32 %v470, %v574
        %v576 = vpop.f32.mrf.mxu0
        %577 = vmatprep.mubr.f32.mxu0 0.0
        %578 = vmatmul.mubr.f32.gmra.mxu0 %v493
        %v579 = vpop.f32.mrf.mxu0
        %v580 = vadd.f32 %v475, %v579
        %v581 = vpop.f32.mrf.mxu0
        %582 = vmatprep.mubr.f32.mxu0 0.0
        %583 = vmatmul.mubr.f32.gmra.mxu0 %v496
        %v584 = vpop.f32.mrf.mxu0
        %v585 = vadd.f32 %v480, %v584
        %v586 = vpop.f32.mrf.mxu0
        %587 = vdwg.mxu0
        %v588 = vtanh.pop %v565
        %v589 = vtanh.pop %v570
        %v590 = vtanh.pop %v575
        %v591 = vtanh.pop %v580
        %v592 = vtanh.pop %v585
        %v593 = vld [vmem:[%s5] sm:$0xff]
        %v594 = vld [vmem:[%s5 + $0x8] sm:$0xff]
        %v595 = vld [vmem:[%s5 + $0x10] sm:$0xff]
        %v596 = vld [vmem:[%s5 + $0x18] sm:$0xff]
        %v597 = vld [vmem:[%s6] sm:$0x1]
        %v599 = vlaneseq
        %v600 = vshrl.u32 %v599, 7
        %v601 = vsub.s32 0, %v600
        %v602 = vrot.slane %v597, %v601
        %v605 = vsel %vm279, %v588, 0
        %v608 = vsel %vm279, %v589, 0
        %v611 = vsel %vm279, %v590, 0
        %v614 = vsel %vm279, %v591, 0
        %v617 = vsel %vm279, %v592, 0
        %619 = vmatprep.subr.mxu0 0.0
        %620 = vmatpush1.msra.mxu0 0.0
        %621 = vmatprep.subr.mxu0 0.0
        %622 = vmatpush1.msra.mxu0 0.0
        %623 = vmatprep.subr.mxu0 0.0
        %624 = vmatpush1.msra.mxu0 0.0
        %625 = vmatprep.subr.mxu0 0.0
        %626 = vmatpush1.msra.mxu0 0.0
        %627 = vmatprep.subr.mxu0 0.0
        %628 = vmatpush1.msra.mxu0 0.0
        %629 = vmatprep.subr.mxu0 0.0
        %630 = vmatpush1.msra.mxu0 0.0
        %631 = vmatprep.subr.mxu0 0.0
        %632 = vmatpush1.msra.mxu0 0.0
        %633 = vmatprep.subr.mxu0 0.0
        %634 = vmatpush1.msra.mxu0 0.0
        %635 = vmatprep.subr.mxu0 0.0
        %636 = vmatpush1.msra.mxu0 0.0
        %637 = vmatprep.subr.mxu0 0.0
        %638 = vmatpush1.msra.mxu0 0.0
        %639 = vmatprep.subr.mxu0 0.0
        %640 = vmatpush1.msra.mxu0 0.0
        %641 = vmatprep.subr.mxu0 0.0
        %642 = vmatpush1.msra.mxu0 0.0
        %643 = vmatprep.subr.mxu0 0.0
        %644 = vmatpush1.msra.mxu0 %v596
        %645 = vmatprep.subr.mxu0 0.0
        %646 = vmatpush1.msra.mxu0 %v595
        %647 = vmatprep.subr.mxu0 0.0
        %648 = vmatpush1.msra.mxu0 %v594
        %649 = vmatprep.subr.mxu0 0.0
        %650 = vmatpush1.msra.mxu0 %v593
        %651 = vmatprep.subr.mxu0 0.0
        %652 = vmatpush2.msra.mxu0 0.0
        %653 = vmatprep.subr.mxu0 0.0
        %654 = vmatpush2.msra.mxu0 0.0
        %655 = vmatprep.subr.mxu0 0.0
        %656 = vmatpush2.msra.mxu0 0.0
        %657 = vmatprep.subr.mxu0 0.0
        %658 = vmatpush2.msra.mxu0 0.0
        %659 = vmatprep.subr.mxu0 0.0
        %660 = vmatpush2.msra.mxu0 0.0
        %661 = vmatprep.subr.mxu0 0.0
        %662 = vmatpush2.msra.mxu0 0.0
        %663 = vmatprep.subr.mxu0 0.0
        %664 = vmatpush2.msra.mxu0 0.0
        %665 = vmatprep.subr.mxu0 0.0
        %666 = vmatpush2.msra.mxu0 0.0
        %667 = vmatprep.subr.mxu0 0.0
        %668 = vmatpush2.msra.mxu0 0.0
        %669 = vmatprep.subr.mxu0 0.0
        %670 = vmatpush2.msra.mxu0 0.0
        %671 = vmatprep.subr.mxu0 0.0
        %672 = vmatpush2.msra.mxu0 0.0
        %673 = vmatprep.subr.mxu0 0.0
        %674 = vmatpush2.msra.mxu0 0.0
        %675 = vmatprep.subr.mxu0 0.0
        %676 = vmatpush2.msra.mxu0 0.0
        %677 = vmatprep.subr.mxu0 0.0
        %678 = vmatpush2.msra.mxu0 0.0
        %679 = vmatprep.subr.mxu0 0.0
        %680 = vmatpush2.msra.mxu0 0.0
        %681 = vmatprep.subr.mxu0 0.0
        %682 = vmatpush2.msra.mxu0 0.0
        %683 = vmatprep.mubr.f32.mxu0 0.0
        %684 = vmatmul.mubr.f32.gmra.mxu0 %v605
        %v685 = vpop.f32.mrf.mxu0
        %v686 = vadd.f32 %v602, %v685
        %v687 = vpop.f32.mrf.mxu0
        %688 = vmatprep.mubr.f32.mxu0 0.0
        %689 = vmatmul.mubr.f32.gmra.mxu0 %v608
        %v690 = vpop.f32.mrf.mxu0
        %v691 = vadd.f32 %v602, %v690
        %v692 = vpop.f32.mrf.mxu0
        %693 = vmatprep.mubr.f32.mxu0 0.0
        %694 = vmatmul.mubr.f32.gmra.mxu0 %v611
        %v695 = vpop.f32.mrf.mxu0
        %v696 = vadd.f32 %v602, %v695
        %v697 = vpop.f32.mrf.mxu0
        %698 = vmatprep.mubr.f32.mxu0 0.0
        %699 = vmatmul.mubr.f32.gmra.mxu0 %v614
        %v700 = vpop.f32.mrf.mxu0
        %v701 = vadd.f32 %v602, %v700
        %v702 = vpop.f32.mrf.mxu0
        %703 = vmatprep.mubr.f32.mxu0 0.0
        %704 = vmatmul.mubr.f32.gmra.mxu0 %v617
        %v705 = vpop.f32.mrf.mxu0
        %v706 = vadd.f32 %v602, %v705
        %v707 = vpop.f32.mrf.mxu0
        %708 = vdwg.mxu0
        %709 = vst [vmem:[%s269] sm:$0xff] %v686
        %710 = vst [vmem:[%s269 + $0x8] sm:$0xff] %v691
        %711 = vst [vmem:[%s269 + $0x10] sm:$0xff] %v696
        %712 = vst [vmem:[%s269 + $0x18] sm:$0xff] %v701
        %713 = vst [vmem:[%s269 + $0x20] sm:$0xff] %v706
        %s714 = sand.u32 %s181, 1
        %s715 = scalar_lea.sflag [#allocation3], %s714
        %s716 = sand.u32 %s181, 1
        %s717 = smul.addr %s716, 40
        %s718 = scalar_lea.vmem [#allocation2], %s717
        // Predicated region
        $region49: #{tpu_custom_call.1} parent=47 // pred_check
          %p719 = pneg %p191
        $region50: #{tpu_custom_call.1} parent=47 // pred_check_branch
          %721 = sbr.rel (%p719) target = $region52
        $region51: #{tpu_custom_call.1} parent=47 // pred_region
          %s723 = ssub.s32 640, 640
          %724 = vsyncadd %s715, %s723
          %s725 = smul.addr %s21, 5
          %s726 = smul.addr %s725, 128
          %s727 = scalar_lea.hbm %s7, %s726
          %s728 = sshll.u32 %s718, 4
          %s729 = int_to_ptr.vmem [resolvable:$true] %s728
          %734 = dma.vmem_to_hbm [thread:$0]  %s729, 640, %s727, %s715, 128, 128, 8
        $region52: #{tpu_custom_call.1} parent=47 // pred_fallthru
          _
      $region48: #{tpu_custom_call.1} parent=5 // pred_fallthru
        _
      %p735 = scmp.le.s32.totalorder 2, %s16
      // Predicated region
      $region53: #{tpu_custom_call.1} parent=5 // pred_check
        %p736 = pneg %p735
      $region54: #{tpu_custom_call.1} parent=5 // pred_check_branch
        %738 = sbr.rel (%p736) target = $region56
      $region55: #{tpu_custom_call.1} parent=5 // pred_region
        %s739 = ssub.s32 %s16, 2
        // Predicated region
        $region57: #{tpu_custom_call.1} parent=55 // pred_check
          %p740 = pneg %p197
        $region58: #{tpu_custom_call.1} parent=55 // pred_check_branch
          %742 = sbr.rel (%p740) target = $region60
        $region59: #{tpu_custom_call.1} parent=55 // pred_region
          %s743 = sand.u32 %s182, 1
          %s744 = scalar_lea.sflag [#allocation3], %s743
          %s745 = sand.u32 %s182, 1
          %s746 = smul.addr %s745, 40
          %s747 = scalar_lea.vmem [#allocation2], %s746
          %748 = dma.done %s744, 640
        $region60: #{tpu_custom_call.1} parent=55 // pred_fallthru
          _
      $region56: #{tpu_custom_call.1} parent=5 // pred_fallthru
        _
    $region6: #{tpu_custom_call.1} parent=1 // loop_footer
      %s20 = sadd.s32 1, %s16
    $region7: #{tpu_custom_call.1} parent=1 // loop_footer_branch
      %15 = sbr.rel target = $region3
    $region8: #{tpu_custom_call.1} parent=1 // loop_exit
      _
    %749 = vsyncpa [#allocation3], 1
    %s750 = scalar_lea.sflag [#allocation3], 1
    %751 = vsyncpa %s750, 1

</llo_original>
